<compile_context>
chip_gen: v6e
topology: v6e:2x2x1
jax: 0.10.0
libtpu: 0.0.40
codegen_flags: <defaults>
</compile_context>

<pallas_src>
import jax
import jax.numpy as jnp
from jax.experimental import pallas as pl
from jax.experimental.pallas import tpu as pltpu


_LANE = 128
_TM_CAP = 1024
_TK_CAP = 2048
_TN_CAP = 1024
# Double-buffered tiles + f32 accumulator budget.  28 MiB fits v7x's 32 MiB
# default scoped VMEM / 64 MiB physical with headroom; trivially fits v5e/v6e
# once vmem_limit_bytes is raised (done below).
_TILE_BUDGET_BYTES = 28 << 20
_VMEM_LIMIT_CAP = 48 << 20       # stay well under v7x's 64 MiB physical VMEM


def _round_up(x, m):
    return (x + m - 1) // m * m


def _pick_tile(dim, align, cap):
    """Largest multiple of `align` that divides `dim` and is <= cap.

    If dim <= cap, returns the full dim (a full-extent block always satisfies
    the (8, 128) tiling rule).  If dim > cap and no aligned divisor exists the
    caller is expected to have padded `dim` (see prepare_mlp_params), so the
    `align` floor is always a valid divisor here."""
    if dim <= cap:
        return dim
    best = None
    t = align
    while t <= cap:
        if dim % t == 0:
            best = t
        t += align
    return best if best is not None else dim


def _vmem_tile_bytes(tm, tk, tn, in_itemsize, out_itemsize):
    """Double-buffered x/w/bias/out tiles + single f32 accumulator."""
    return (2 * (tm * tk + tk * tn) * in_itemsize   # x, w (double-buffered)
            + 2 * tn * 4                            # bias row (f32)
            + 2 * tm * tn * out_itemsize            # output tile
            + tm * tn * 4)                          # f32 accumulator scratch


def _select_tiles(M_pad, K_pad, N_pad, m_align, in_itemsize, out_itemsize):
    # Priority: tm first (weight is re-read M_pad/tm times -> dominant HBM
    # lever), then tk (amortizes the accumulator read-modify-write per k step,
    # matters most on v5e's single vst slot), then tn.
    tm = _pick_tile(M_pad, m_align, _TM_CAP)
    tk = _pick_tile(K_pad, _LANE, _TK_CAP)
    tn = _pick_tile(N_pad, _LANE, _TN_CAP)

    # Shrink (largest aligned-divisor <= half the current tile) until the
    # double-buffered working set fits the per-generation-safe budget.
    while _vmem_tile_bytes(tm, tk, tn, in_itemsize, out_itemsize) > _TILE_BUDGET_BYTES:
        if tk > _LANE and K_pad % _LANE == 0 and tk >= max(tm, tn):
            tk = _pick_tile(K_pad, _LANE, tk // 2)
        elif tn > _LANE and tn >= tm:
            tn = _pick_tile(N_pad, _LANE, tn // 2)
        elif tm > m_align:
            tm = _pick_tile(M_pad, m_align, tm // 2)
        else:
            break

    # v7x has 2 TensorCores: make sure the parallel (i, j) grid has >= 2 blocks
    # when the feature dim allows it, so "parallel" semantics can shard work.
    if M_pad // tm == 1 and N_pad // tn == 1 and N_pad % 256 == 0:
        tn = _pick_tile(N_pad, _LANE, N_pad // 2)

    return tm, tk, tn


def _mlp_block_kernel(x_ref, w_ref, b_ref, o_ref, acc_ref):
    # x_ref  : (tm, tk)  input tile
    # w_ref  : (tk, tn)  weight tile in [K, N] layout (transposed once at init)
    # b_ref  : (1,  tn)  f32 bias row
    # o_ref  : (tm, tn)  output tile (tn is a multiple of 128 -> lane-dense vst)
    # acc_ref: (tm, tn)  f32 accumulator scratch, resident across the k axis
    k = pl.program_id(2)

    @pl.when(k == 0)
    def _():
        acc_ref[...] = jnp.zeros_like(acc_ref)

    # Plain [M,K] @ [K,N] -> native MXU path, no transpose anywhere per call.
    acc_ref[...] += jnp.dot(
        x_ref[...], w_ref[...], preferred_element_type=jnp.float32
    )

    @pl.when(k == pl.num_programs(2) - 1)
    def _():
        out = acc_ref[...] + b_ref[...]          # bias only in the finalize step
        out = jnp.maximum(out, 0.0)              # ReLU (dropout p=0.0 -> identity)
        o_ref[...] = out.astype(o_ref.dtype)


def prepare_mlp_params(weight, bias, compute_dtype=None):
    """One-time (module-init) param prep.

    - Transposes the PyTorch [N, K] weight to [K, N] ONCE so the kernel uses
      the native MXU contraction (no per-call transpose, no XLU vxpose).
    - Pads N up to a multiple of 128 so kernel stores are lane-dense; padded
      columns are all-zero -> ReLU(0) = 0, sliced off in the wrapper.
    - Pads K up to a multiple of 128 when K is too large for a full-extent
      block, so the K tile never exceeds the VMEM budget.
    - Optionally casts the weight to a narrower compute dtype (e.g. bf16 on
      v6e/v7x) while the bias / accumulator stay f32."""
    N, K = weight.shape
    n_pad = _round_up(N, _LANE)
    k_pad = K if (K <= _TK_CAP or K % _LANE == 0) else _round_up(K, _LANE)

    w = weight.T                                  # [K, N], done once at init
    if n_pad != N or k_pad != K:
        w = jnp.pad(w, ((0, k_pad - K), (0, n_pad - N)))
        bias = jnp.pad(bias, (0, n_pad - N))
    if compute_dtype is not None:
        w = w.astype(compute_dtype)
    return w, bias.reshape(1, n_pad).astype(jnp.float32)


def mlp_block_apply(x, weight_kn, bias_row, n_out):
    """Fused Linear + ReLU.

    x:         [M, K]
    weight_kn: [K_pad, N_pad]  ([K, N] layout, N padded to a multiple of 128)
    bias_row:  [1, N_pad]      (f32)
    n_out:     true output feature count (columns to keep)."""
    M, K = x.shape
    K_pad, N_pad = weight_kn.shape
    assert K <= K_pad and N_pad % _LANE == 0

    compute_dtype = weight_kn.dtype
    out_dtype = x.dtype

    # bf16 packs 2 rows per sublane -> align the batch dim to 16 in that case.
    m_align = 16 if compute_dtype == jnp.bfloat16 else 8
    M_pad = _round_up(M, m_align)

    # Only pad / cast x when actually needed; callers should pass an aligned
    # batch (and K) to avoid this extra HBM pass entirely.
    if M_pad != M or K_pad != K:
        x = jnp.pad(x, ((0, M_pad - M), (0, K_pad - K)))
    if x.dtype != compute_dtype:
        x = x.astype(compute_dtype)

    in_itemsize = jnp.dtype(compute_dtype).itemsize
    out_itemsize = jnp.dtype(out_dtype).itemsize

    tm, tk, tn = _select_tiles(M_pad, K_pad, N_pad, m_align, in_itemsize, out_itemsize)
    grid_m, grid_n, grid_k = M_pad // tm, N_pad // tn, K_pad // tk
    grid = (grid_m, grid_n, grid_k)               # reduction (k) axis last

    # Explicit scoped-VMEM limit derived from the actual working set: unlocks
    # big tiles on v5e (16 MiB default) and stays <= 48 MiB, safe on v7x.
    vmem_needed = _vmem_tile_bytes(tm, tk, tn, in_itemsize, out_itemsize)
    vmem_limit = int(min(max(2 * vmem_needed, 16 << 20), _VMEM_LIMIT_CAP))

    # bytes_accessed includes operand re-streaming across the 3-D grid.
    cost = pl.CostEstimate(
        flops=2 * M_pad * N_pad * K_pad,
        transcendentals=0,
        bytes_accessed=int(
            M_pad * K_pad * in_itemsize * grid_n       # x re-read per N block
            + K_pad * N_pad * in_itemsize * grid_m     # weight re-read per M block
            + N_pad * 4                                # bias
            + M_pad * N_pad * out_itemsize             # output written once
        ),
    )

    out = pl.pallas_call(
        _mlp_block_kernel,
        out_shape=jax.ShapeDtypeStruct((M_pad, N_pad), out_dtype),
        grid_spec=pltpu.PrefetchScalarGridSpec(
            num_scalar_prefetch=0,
            grid=grid,
            in_specs=[
                pl.BlockSpec((tm, tk), lambda i, j, k: (i, k)),   # x
                pl.BlockSpec((tk, tn), lambda i, j, k: (k, j)),   # weight [K, N]
                pl.BlockSpec((1, tn), lambda i, j, k: (0, j)),    # bias
            ],
            out_specs=pl.BlockSpec((tm, tn), lambda i, j, k: (i, j)),
            scratch_shapes=[pltpu.VMEM((tm, tn), jnp.float32)],
        ),
        compiler_params=pltpu.CompilerParams(
            dimension_semantics=("parallel", "parallel", "arbitrary"),
            vmem_limit_bytes=vmem_limit,
        ),
        cost_estimate=cost,
    )(x, weight_kn, bias_row)

    return out[:M, :n_out]


def mlp_block(x, weight, bias, compute_dtype=None):
    """Convenience wrapper: PyTorch-layout weight [N, K], bias [N].

    For real use, call prepare_mlp_params() once at init and reuse the padded
    params across calls; this wrapper re-preps every call (fine for a test)."""
    w_p, b_p = prepare_mlp_params(weight, bias, compute_dtype=compute_dtype)
    return mlp_block_apply(x, w_p, b_p, weight.shape[0])


def reference(x, weight, bias):
    return jnp.maximum(x @ weight.T + bias, 0.0)


if __name__ == "__main__":
    # Small shapes implied by the module: batch=8, input_size=32, output_size=64.
    batch, input_size, output_size = 8, 32, 64

    key = jax.random.PRNGKey(0)
    kx, kw, kb = jax.random.split(key, 3)

    x = jax.random.normal(kx, (batch, input_size), dtype=jnp.float32)

    # Deterministic PyTorch-style Linear init: U(-1/sqrt(fan_in), 1/sqrt(fan_in)).
    bound = 1.0 / (input_size ** 0.5)
    weight = jax.random.uniform(
        kw, (output_size, input_size), minval=-bound, maxval=bound, dtype=jnp.float32
    )
    bias = jax.random.uniform(
        kb, (output_size,), minval=-bound, maxval=bound, dtype=jnp.float32
    )

    # Init-time param prep (transpose to [K, N] + lane-dense padding), then apply.
    # (compute_dtype=jnp.bfloat16 is available for v6e/v7x; kept f32 here to
    #  match the PyTorch module's numerics exactly.)
    w_p, b_p = prepare_mlp_params(weight, bias)
    out = mlp_block_apply(x, w_p, b_p, output_size)
    out = jax.block_until_ready(out)

    ref = reference(x, weight, bias)
    assert out.shape == (batch, output_size)
    assert jnp.allclose(out, ref, atol=1e-5, rtol=1e-5)

    print("KERNEL_OK")
</pallas_src>

<mosaic_0001>
module attributes {stable_mosaic.version = 11 : i64} {
  func.func @_mlp_block_kernel(%arg0: i32, %arg1: i32, %arg2: i32, %arg3: memref<8x32xf32, #tpu.memory_space<vmem>>, %arg4: memref<32x128xf32, #tpu.memory_space<vmem>>, %arg5: memref<1x128xf32, #tpu.memory_space<vmem>>, %arg6: memref<8x128xf32, #tpu.memory_space<vmem>>, %arg7: memref<8x128xf32, #tpu.memory_space<vmem>>) attributes {dimension_semantics = [#tpu.dimension_semantics<parallel>, #tpu.dimension_semantics<parallel>, #tpu.dimension_semantics<arbitrary>], iteration_bounds = array<i64: 1, 1, 1>, scalar_prefetch = 0 : i64, scratch_operands = 1 : i64, tpu.core_type = #tpu.core_type<tc>, window_params = [{transform_indices = @transform_0, window_bounds = array<i64: 8, 32>}, {transform_indices = @transform_1, window_bounds = array<i64: 32, 128>}, {transform_indices = @transform_2, window_bounds = array<i64: 1, 128>}, {transform_indices = @transform_3, window_bounds = array<i64: 8, 128>}]} {
    %c0_i32 = arith.constant 0 : i32
    %0 = arith.cmpi eq, %arg2, %c0_i32 : i32
    %1 = arith.extui %0 : i1 to i32
    %c0_i32_0 = arith.constant 0 : i32
    %2 = arith.cmpi ne, %1, %c0_i32_0 : i32
    scf.if %2 {
      %cst_10 = arith.constant 0.000000e+00 : f32
      %12 = vector.broadcast %cst_10 : f32 to vector<8x128xf32>
      %c0_11 = arith.constant 0 : index
      %c0_12 = arith.constant 0 : index
      %13 = vector.load %arg7[%c0_11, %c0_12] : memref<8x128xf32, #tpu.memory_space<vmem>>, vector<8x128xf32>
      tpu.vector_store %arg7[%c0_11, %c0_12], %12 {strides = array<i32>} : memref<8x128xf32, #tpu.memory_space<vmem>>, vector<8x128xf32>,
    } else {
    }
    %c0 = arith.constant 0 : index
    %c0_1 = arith.constant 0 : index
    %3 = vector.load %arg7[%c0, %c0_1] : memref<8x128xf32, #tpu.memory_space<vmem>>, vector<8x128xf32>
    %c0_2 = arith.constant 0 : index
    %c0_3 = arith.constant 0 : index
    %4 = vector.load %arg3[%c0_2, %c0_3] : memref<8x32xf32, #tpu.memory_space<vmem>>, vector<8x32xf32>
    %c0_4 = arith.constant 0 : index
    %c0_5 = arith.constant 0 : index
    %5 = vector.load %arg4[%c0_4, %c0_5] : memref<32x128xf32, #tpu.memory_space<vmem>>, vector<32x128xf32>
    %cst = arith.constant dense<0.000000e+00> : vector<8x128xf32>
    %6 = tpu.matmul %4, %5, %cst {dimension_numbers = #tpu.dot_dimension_numbers<[1], [0], [0], [1], [0, 0, 1, 1], [], []>} : vector<8x32xf32>, vector<32x128xf32>, vector<8x128xf32> -> vector<8x128xf32>
    %7 = arith.addf %3, %6 : vector<8x128xf32>
    %c0_6 = arith.constant 0 : index
    %c0_7 = arith.constant 0 : index
    %8 = vector.load %arg7[%c0_6, %c0_7] : memref<8x128xf32, #tpu.memory_space<vmem>>, vector<8x128xf32>
    tpu.vector_store %arg7[%c0_6, %c0_7], %7 {strides = array<i32>} : memref<8x128xf32, #tpu.memory_space<vmem>>, vector<8x128xf32>,
    %c0_i32_8 = arith.constant 0 : i32
    %9 = arith.cmpi eq, %arg2, %c0_i32_8 : i32
    %10 = arith.extui %9 : i1 to i32
    %c0_i32_9 = arith.constant 0 : i32
    %11 = arith.cmpi ne, %10, %c0_i32_9 : i32
    scf.if %11 {
      %c0_10 = arith.constant 0 : index
      %c0_11 = arith.constant 0 : index
      %12 = vector.load %arg7[%c0_10, %c0_11] : memref<8x128xf32, #tpu.memory_space<vmem>>, vector<8x128xf32>
      %c0_12 = arith.constant 0 : index
      %c0_13 = arith.constant 0 : index
      %13 = vector.load %arg5[%c0_12, %c0_13] : memref<1x128xf32, #tpu.memory_space<vmem>>, vector<1x128xf32>
      %14 = vector.broadcast %13 : vector<1x128xf32> to vector<8x128xf32>
      %15 = arith.addf %12, %14 : vector<8x128xf32>
      %cst_14 = arith.constant 0.000000e+00 : f32
      %16 = vector.broadcast %cst_14 : f32 to vector<8x128xf32>
      %17 = arith.maximumf %15, %16 : vector<8x128xf32>
      %c0_15 = arith.constant 0 : index
      %c0_16 = arith.constant 0 : index
      %18 = vector.load %arg6[%c0_15, %c0_16] : memref<8x128xf32, #tpu.memory_space<vmem>>, vector<8x128xf32>
      tpu.vector_store %arg6[%c0_15, %c0_16], %17 {strides = array<i32>} : memref<8x128xf32, #tpu.memory_space<vmem>>, vector<8x128xf32>,
    } else {
    }
    return
  }
  func.func @transform_0(%arg0: i32, %arg1: i32, %arg2: i32) -> (i32, i32) {
    %c0_i32 = arith.constant 0 : i32
    return %arg0, %arg2 : i32, i32
  }
  func.func @transform_1(%arg0: i32, %arg1: i32, %arg2: i32) -> (i32, i32) {
    %c0_i32 = arith.constant 0 : i32
    return %arg2, %arg1 : i32, i32
  }
  func.func @transform_2(%arg0: i32, %arg1: i32, %arg2: i32) -> (i32, i32) {
    %c0_i32 = arith.constant 0 : i32
    %c0_i32_0 = arith.constant 0 : i32
    return %c0_i32, %arg1 : i32, i32
  }
  func.func @transform_3(%arg0: i32, %arg1: i32, %arg2: i32) -> (i32, i32) {
    %c0_i32 = arith.constant 0 : i32
    return %arg0, %arg1 : i32, i32
  }
}

</mosaic_0001>

<llo_original>
// kernel: tpu_custom_call.1
$region0: #{tpu_custom_call.1}
  #allocation0 [shape = 'u32[]', space=smem, size = 0x4, offset = 0x4, fixed_abs, tag = 'smem constant byte address 0x4 - core index']
  #allocation1 [shape = 'u32[144,128]{1,0:T(1,128)}', space=vmem, size = 0x12000, scoped, tag = 'internal scratch']
  #allocation2 [shape = 'f32[8,128]{1,0:T(8,128)}', space=vmem, size = 0x1000, scoped, tag = 'scratch operand']
  %s0 = inlined_call_operand.hbm [shape: f32[8,32], index: 0, kind: input, shape index: {}]
  %s1 = inlined_call_operand.hbm [shape: f32[32,128], index: 1, kind: input, shape index: {}]
  %s2 = inlined_call_operand.vmem [shape: f32[1,128], index: 2, kind: input, shape index: {}]
  %s3 = inlined_call_operand.hbm [shape: f32[8,128], index: 3, kind: output, shape index: {}]
  %s4 = sld [smem:[#allocation0]]
  $region38: #{tpu_custom_call.1} parent=0
    _
  %s6 = ssub.s32 1, %s4
  %s7 = scalar_select 0, %s6, %s4
  $region1: #{tpu_custom_call.1} parent=0
    #allocation3 [shape = 'u8[4096]{0}', space=vmem, size = 0x1000, scoped, tag = 'input window, operand 0, single buffered']
    #allocation4 [shape = 's32[1]{0}', space=sflag, size = 0x4, scoped, tag = 'scoped memory for tpu_custom_call.1']
    #allocation5 [shape = 's32[1]{0}', space=sflag, size = 0x4, scoped, tag = 'scoped memory for tpu_custom_call.1']
    #allocation6 [shape = 'u8[16384]{0}', space=vmem, size = 0x4000, scoped, tag = 'input window, operand 1, single buffered']
    #allocation7 [shape = 's32[1]{0}', space=sflag, size = 0x4, scoped, tag = 'scoped memory for tpu_custom_call.1']
    #allocation8 [shape = 'u8[4096]{0}', space=vmem, size = 0x1000, scoped, tag = 'output window, operand 0, single buffered']
    %8 = vsyncpa [#allocation4], 0
    %9 = vsyncpa [#allocation7], 0
    %10 = vsyncpa [#allocation5], 0
    // Predicated region
    $region2: #{tpu_custom_call.1} parent=1 // pred_check
      _
    $region3: #{tpu_custom_call.1} parent=1 // pred_check_branch
      %12 = sbr.rel (0) target = $region5
    $region4: #{tpu_custom_call.1} parent=1 // pred_region
      %s14 = ssub.s32 128, 128
      %15 = vsyncadd [#allocation4], %s14
      %s17 = sshll.u32 [#allocation3], 4
      %s18 = int_to_ptr.vmem [resolvable:$true] %s17
      %20 = dma.hbm_to_vmem [thread:$0]  %s0, 128, %s18, [#allocation4]
    $region5: #{tpu_custom_call.1} parent=1 // pred_fallthru
      _
    // Predicated region
    $region6: #{tpu_custom_call.1} parent=1 // pred_check
      _
    $region7: #{tpu_custom_call.1} parent=1 // pred_check_branch
      %22 = sbr.rel (0) target = $region9
    $region8: #{tpu_custom_call.1} parent=1 // pred_region
      %s24 = ssub.s32 512, 512
      %25 = vsyncadd [#allocation7], %s24
      %s26 = sshll.u32 [#allocation6], 4
      %s27 = int_to_ptr.vmem [resolvable:$true] %s26
      %32 = dma.hbm_to_vmem [thread:$0]  %s1, 512, %s27, [#allocation7], 128, 128, 8
    $region9: #{tpu_custom_call.1} parent=1 // pred_fallthru
      _
    // Predicated region
    $region10: #{tpu_custom_call.1} parent=1 // pred_check
      _
    $region11: #{tpu_custom_call.1} parent=1 // pred_check_branch
      %34 = sbr.rel (0) target = $region13
    $region12: #{tpu_custom_call.1} parent=1 // pred_region
      _
    $region13: #{tpu_custom_call.1} parent=1 // pred_fallthru
      _
    // Predicated region
    $region14: #{tpu_custom_call.1} parent=1 // pred_check
      _
    $region15: #{tpu_custom_call.1} parent=1 // pred_check_branch
      %36 = sbr.rel (0) target = $region17
    $region16: #{tpu_custom_call.1} parent=1 // pred_region
      %37 = dma.done [#allocation4], 128
    $region17: #{tpu_custom_call.1} parent=1 // pred_fallthru
      _
    // Predicated region
    $region18: #{tpu_custom_call.1} parent=1 // pred_check
      _
    $region19: #{tpu_custom_call.1} parent=1 // pred_check_branch
      %39 = sbr.rel (0) target = $region21
    $region20: #{tpu_custom_call.1} parent=1 // pred_region
      %40 = dma.done [#allocation7], 512
    $region21: #{tpu_custom_call.1} parent=1 // pred_fallthru
      _
    %p41 = scmp.eq.s32.totalorder 0, 0
    // Predicated region
    $region22: #{tpu_custom_call.1} parent=1 // pred_check
      %p42 = pneg %p41
    $region23: #{tpu_custom_call.1} parent=1 // pred_check_branch
      %44 = sbr.rel (%p42) target = $region25
    $region24: #{tpu_custom_call.1} parent=1 // pred_region
      %45 = vst [vmem:[#allocation2] sm:$0xff] 0.0
    $region25: #{tpu_custom_call.1} parent=1 // pred_fallthru
      _
    %v46 = vld [vmem:[#allocation2] sm:$0xff]
    %v47 = vld [vmem:[#allocation3] sm:$0xff]
    %v48 = vld [vmem:[#allocation6] sm:$0xff]
    %v49 = vld [vmem:[#allocation6 + $0x8] sm:$0xff]
    %v50 = vld [vmem:[#allocation6 + $0x10] sm:$0xff]
    %v51 = vld [vmem:[#allocation6 + $0x18] sm:$0xff]
    %vm52 = vcmask 261120
    %v54 = vsel %vm52, %v47, 0
    %56 = vmatprep.subr.mxu0 0.0
    %57 = vmatpush1.msra.mxu0 0.0
    %58 = vmatprep.subr.mxu0 0.0
    %59 = vmatpush1.msra.mxu0 0.0
    %60 = vmatprep.subr.mxu0 0.0
    %61 = vmatpush1.msra.mxu0 0.0
    %62 = vmatprep.subr.mxu0 0.0
    %63 = vmatpush1.msra.mxu0 0.0
    %64 = vmatprep.subr.mxu0 0.0
    %65 = vmatpush1.msra.mxu0 0.0
    %66 = vmatprep.subr.mxu0 0.0
    %67 = vmatpush1.msra.mxu0 0.0
    %68 = vmatprep.subr.mxu0 0.0
    %69 = vmatpush1.msra.mxu0 0.0
    %70 = vmatprep.subr.mxu0 0.0
    %71 = vmatpush1.msra.mxu0 0.0
    %72 = vmatprep.subr.mxu0 0.0
    %73 = vmatpush1.msra.mxu0 0.0
    %74 = vmatprep.subr.mxu0 0.0
    %75 = vmatpush1.msra.mxu0 0.0
    %76 = vmatprep.subr.mxu0 0.0
    %77 = vmatpush1.msra.mxu0 0.0
    %78 = vmatprep.subr.mxu0 0.0
    %79 = vmatpush1.msra.mxu0 0.0
    %80 = vmatprep.subr.mxu0 0.0
    %81 = vmatpush1.msra.mxu0 %v51
    %82 = vmatprep.subr.mxu0 0.0
    %83 = vmatpush1.msra.mxu0 %v50
    %84 = vmatprep.subr.mxu0 0.0
    %85 = vmatpush1.msra.mxu0 %v49
    %86 = vmatprep.subr.mxu0 0.0
    %87 = vmatpush1.msra.mxu0 %v48
    %88 = vmatprep.subr.mxu0 0.0
    %89 = vmatpush2.msra.mxu0 0.0
    %90 = vmatprep.subr.mxu0 0.0
    %91 = vmatpush2.msra.mxu0 0.0
    %92 = vmatprep.subr.mxu0 0.0
    %93 = vmatpush2.msra.mxu0 0.0
    %94 = vmatprep.subr.mxu0 0.0
    %95 = vmatpush2.msra.mxu0 0.0
    %96 = vmatprep.subr.mxu0 0.0
    %97 = vmatpush2.msra.mxu0 0.0
    %98 = vmatprep.subr.mxu0 0.0
    %99 = vmatpush2.msra.mxu0 0.0
    %100 = vmatprep.subr.mxu0 0.0
    %101 = vmatpush2.msra.mxu0 0.0
    %102 = vmatprep.subr.mxu0 0.0
    %103 = vmatpush2.msra.mxu0 0.0
    %104 = vmatprep.subr.mxu0 0.0
    %105 = vmatpush2.msra.mxu0 0.0
    %106 = vmatprep.subr.mxu0 0.0
    %107 = vmatpush2.msra.mxu0 0.0
    %108 = vmatprep.subr.mxu0 0.0
    %109 = vmatpush2.msra.mxu0 0.0
    %110 = vmatprep.subr.mxu0 0.0
    %111 = vmatpush2.msra.mxu0 0.0
    %112 = vmatprep.subr.mxu0 0.0
    %113 = vmatpush2.msra.mxu0 0.0
    %114 = vmatprep.subr.mxu0 0.0
    %115 = vmatpush2.msra.mxu0 0.0
    %116 = vmatprep.subr.mxu0 0.0
    %117 = vmatpush2.msra.mxu0 0.0
    %118 = vmatprep.subr.mxu0 0.0
    %119 = vmatpush2.msra.mxu0 0.0
    %120 = vmatprep.mubr.f32.mxu0 0.0
    %121 = vmatmul.mubr.f32.gmra.mxu0 %v54
    %v122 = vpop.f32.mrf.mxu0
    %v123 = vadd.f32 0.0, %v122
    %v124 = vpop.f32.mrf.mxu0
    %125 = vdwg.mxu0
    %v126 = vadd.f32 %v46, %v123
    %127 = vst [vmem:[#allocation2] sm:$0xff] %v126
    // Predicated region
    $region26: #{tpu_custom_call.1} parent=1 // pred_check
      %p128 = pneg %p41
    $region27: #{tpu_custom_call.1} parent=1 // pred_check_branch
      %130 = sbr.rel (%p128) target = $region29
    $region28: #{tpu_custom_call.1} parent=1 // pred_region
      %v131 = vld [vmem:[#allocation2] sm:$0xff]
      %v132 = vld [vmem:[%s2] sm:$0x1]
      %v134 = vlaneseq
      %v135 = vshrl.u32 %v134, 7
      %v136 = vsub.s32 0, %v135
      %v137 = vrot.slane %v132, %v136
      %v139 = vadd.f32 %v131, %v137
      %v140 = vmax.f32 %v139, 0.0
      %141 = vst [vmem:[#allocation8] sm:$0xff] %v140
    $region29: #{tpu_custom_call.1} parent=1 // pred_fallthru
      _
    // Predicated region
    $region30: #{tpu_custom_call.1} parent=1 // pred_check
      _
    $region31: #{tpu_custom_call.1} parent=1 // pred_check_branch
      %143 = sbr.rel (0) target = $region33
    $region32: #{tpu_custom_call.1} parent=1 // pred_region
      %s145 = ssub.s32 128, 128
      %146 = vsyncadd [#allocation5], %s145
      %s148 = sshll.u32 [#allocation8], 4
      %s149 = int_to_ptr.vmem [resolvable:$true] %s148
      %151 = dma.vmem_to_hbm [thread:$0]  %s149, 128, %s3, [#allocation5]
    $region33: #{tpu_custom_call.1} parent=1 // pred_fallthru
      _
    // Predicated region
    $region34: #{tpu_custom_call.1} parent=1 // pred_check
      _
    $region35: #{tpu_custom_call.1} parent=1 // pred_check_branch
      %153 = sbr.rel (0) target = $region37
    $region36: #{tpu_custom_call.1} parent=1 // pred_region
      %154 = dma.done [#allocation5], 128
    $region37: #{tpu_custom_call.1} parent=1 // pred_fallthru
      _
    %155 = vsyncpa [#allocation4], 1
    %156 = vsyncpa [#allocation7], 1
    %157 = vsyncpa [#allocation5], 1

</llo_original>
